<compile_context>
chip_gen: v7x
topology: tpu7x:2x2x1
jax: 0.10.0
libtpu: 0.0.40
codegen_flags: <defaults>
</compile_context>

<pallas_src>
import math
import functools

import jax
import jax.numpy as jnp
from jax import lax
from jax.experimental import pallas as pl
from jax.experimental.pallas import tpu as pltpu


# ----------------------------------------------------------------------------
# helpers
# ----------------------------------------------------------------------------
def _round_up(x, m):
    return ((x + m - 1) // m) * m


def _vmem_capacity_bytes():
    """Per-core VMEM capacity; conservative fallback = 64 MiB (v7x per TC)."""
    try:
        info = pltpu.get_tpu_info()
        cap = getattr(info, "vmem_capacity_bytes", None)
        if cap:
            return int(cap)
    except Exception:
        pass
    return 64 * 1024 * 1024


def _tile_and_pad(dim, pref, align):
    """Pick (tile, padded_dim) with tile % align == 0 (or tile == padded_dim),
    padded_dim % tile == 0 and bounded padding waste."""
    pref = max(align, (pref // align) * align)
    if dim <= pref:
        padded = _round_up(dim, align)
        return padded, padded                      # single block
    base = _round_up(dim, align)
    t = pref
    while t > align and base % t:
        t -= align
    if t >= max(align, min(pref, 256) // 2):       # reasonably large divisor
        return t, base
    # otherwise pad the dim up to a multiple of the preferred tile
    return pref, _round_up(dim, pref)


# Batched contraction: contract dim 2 of lhs with dim 2 of rhs, batch dim 0.
_DNUMS = (((2,), (2,)), ((0,), (0,)))


def _block_dot(lhs, rhs, compute_dtype):
    if compute_dtype is not None:                  # opt-in bf16 MXU path
        lhs = lhs.astype(compute_dtype)
        rhs = rhs.astype(compute_dtype)
    return lax.dot_general(lhs, rhs, dimension_numbers=_DNUMS,
                           preferred_element_type=jnp.float32)


# ----------------------------------------------------------------------------
# kernels
# ----------------------------------------------------------------------------
def _kernel_single(lhs_ref, rhs_ref, o_ref, *, inv_scale, compute_dtype):
    # lhs: [nb, tm, tk], rhs: [nb, tn, tk] -> o: [nb, tm, tn]
    s = _block_dot(lhs_ref[...], rhs_ref[...], compute_dtype)
    if inv_scale != 1.0:                           # static Python branch
        s = s * inv_scale
    o_ref[...] = s.astype(o_ref.dtype)


def _kernel_multi_resident(lhs_ref, rhs_ref, o_ref, *, inv_scale, compute_dtype):
    # f32 output is the accumulator itself (output-resident across k).
    k = pl.program_id(3)

    @pl.when(k == 0)
    def _init():
        o_ref[...] = jnp.zeros_like(o_ref)

    o_ref[...] += _block_dot(lhs_ref[...], rhs_ref[...], compute_dtype)

    if inv_scale != 1.0:
        @pl.when(k == pl.num_programs(3) - 1)
        def _finalize():
            o_ref[...] = o_ref[...] * inv_scale


def _kernel_multi_scratch(lhs_ref, rhs_ref, o_ref, acc_ref, *, inv_scale,
                          compute_dtype):
    # non-f32 output: accumulate in an fp32 VMEM scratch, downcast once.
    k = pl.program_id(3)

    @pl.when(k == 0)
    def _init():
        acc_ref[...] = jnp.zeros_like(acc_ref)

    acc_ref[...] += _block_dot(lhs_ref[...], rhs_ref[...], compute_dtype)

    @pl.when(k == pl.num_programs(3) - 1)
    def _finalize():
        s = acc_ref[...]
        if inv_scale != 1.0:
            s = s * inv_scale
        o_ref[...] = s.astype(o_ref.dtype)


# ----------------------------------------------------------------------------
# core driver: dots[b, M, N] = lhs[b, M, K] @ rhs[b, N, K]^T  (then * inv_scale)
# ----------------------------------------------------------------------------
def _dots_core(lhs, rhs, inv_scale, out_dtype, compute_dtype):
    b, M, K = lhs.shape
    _, N, _ = rhs.shape

    in_itemsize = max(jnp.dtype(lhs.dtype).itemsize, jnp.dtype(rhs.dtype).itemsize)
    out_itemsize = jnp.dtype(out_dtype).itemsize

    # ---- generation-aware VMEM budget -----------------------------------
    cap = _vmem_capacity_bytes()
    vmem_limit = min((cap * 3) // 4, 96 * 1024 * 1024)     # scoped limit requested
    tile_budget = (vmem_limit * 11) // 20                  # ~55%: double-buffered set

    # dtype-aware sublane alignment for the lhs/out row dimension
    m_align = {1: 32, 2: 16, 4: 8}.get(jnp.dtype(lhs.dtype).itemsize, 8)

    # ---- tile selection (shrink-to-fit the budget) ----------------------
    pm, pn, pk = 512, 1024, 2048
    while True:
        tm, M_pad = _tile_and_pad(M, pm, m_align)
        if N < 128:
            tn, N_pad = N, N                       # full-dim block (legal)
        else:
            tn, N_pad = _tile_and_pad(N, pn, 128)
        if K < 128:
            tk, K_pad = K, K                       # full-dim block (legal)
        else:
            tk, K_pad = _tile_and_pad(K, pk, 128)

        multi_k = K_pad > tk
        out_resident = multi_k and jnp.dtype(out_dtype) == jnp.dtype(jnp.float32)

        step_bytes = (2 * (tm + tn) * tk * in_itemsize        # double-buffered inputs
                      + 2 * tm * tn * out_itemsize            # double-buffered output
                      + (tm * tn * 4 if (multi_k and not out_resident) else 0))
        if step_bytes <= tile_budget:
            break
        if pm > 128 and tm > 128:
            pm //= 2
        elif pk > 512 and tk > 512:
            pk //= 2
        elif pn > 256 and tn > 256:
            pn //= 2
        elif pm > m_align and tm > m_align:
            pm //= 2
        elif pk > 128 and tk > 128:
            pk //= 2
        elif pn > 128 and tn > 128:
            pn //= 2
        else:
            break

    # ---- batch packing for tiny per-batch matrices ----------------------
    nb = 1
    single_block = (M_pad == tm) and (N_pad == tn) and (K_pad == tk)
    if single_block and b > 1:
        per_batch = (2 * (M_pad + N_pad) * K_pad * in_itemsize
                     + 2 * M_pad * N_pad * out_itemsize)
        nb = max(1, min(b, tile_budget // max(per_batch, 1)))
        nb = min(nb, max(1, b // 2))   # keep >= 2 parallel steps (v7x: 2 TCs)
    b_pad = _round_up(b, nb)

    # ---- wrapper-side zero padding (exact for the contraction dim) ------
    if (b_pad, M_pad, K_pad) != lhs.shape:
        lhs = jnp.pad(lhs, ((0, b_pad - b), (0, M_pad - M), (0, K_pad - K)))
    if (b_pad, N_pad, K_pad) != rhs.shape:
        rhs = jnp.pad(rhs, ((0, b_pad - b), (0, N_pad - N), (0, K_pad - K)))

    grid = (b_pad // nb, M_pad // tm, N_pad // tn, K_pad // tk)

    in_specs = [
        pl.BlockSpec((nb, tm, tk), lambda bi, mi, ni, ki: (bi, mi, ki)),
        pl.BlockSpec((nb, tn, tk), lambda bi, mi, ni, ki: (bi, ni, ki)),
    ]
    out_spec = pl.BlockSpec((nb, tm, tn), lambda bi, mi, ni, ki: (bi, mi, ni))

    if not multi_k:
        kernel = functools.partial(_kernel_single, inv_scale=inv_scale,
                                   compute_dtype=compute_dtype)
        scratch = []
    elif out_resident:
        kernel = functools.partial(_kernel_multi_resident, inv_scale=inv_scale,
                                   compute_dtype=compute_dtype)
        scratch = []
    else:
        kernel = functools.partial(_kernel_multi_scratch, inv_scale=inv_scale,
                                   compute_dtype=compute_dtype)
        scratch = [pltpu.VMEM((nb, tm, tn), jnp.float32)]

    out = pl.pallas_call(
        kernel,
        out_shape=jax.ShapeDtypeStruct((b_pad, M_pad, N_pad), out_dtype),
        grid_spec=pltpu.PrefetchScalarGridSpec(
            num_scalar_prefetch=0,
            grid=grid,
            in_specs=in_specs,
            out_specs=out_spec,
            scratch_shapes=scratch,
        ),
        compiler_params=pltpu.CompilerParams(
            dimension_semantics=("parallel", "parallel", "parallel", "arbitrary"),
            vmem_limit_bytes=int(vmem_limit),
        ),
    )(lhs, rhs)

    if (b_pad, M_pad, N_pad) != (b, M, N):
        out = out[:b, :M, :N]
    return out


# ----------------------------------------------------------------------------
# public wrapper (matches DotProduct.forward)
# ----------------------------------------------------------------------------
def dot_product(t0, t1, scale=False, out_dtype=None, compute_dtype=None):
    """Pallas equivalent of DotProduct.forward.

    t0: [batch, c_len, d]
    t1: [batch, q_len, d]
    returns: [batch, c_len, q_len]
    """
    assert t0.ndim == 3 and t1.ndim == 3
    b, c_len, d = t0.shape
    b2, q_len, d2 = t1.shape
    assert b == b2 and d == d2, "batch / feature dims must match"

    if out_dtype is None:
        out_dtype = jnp.result_type(t0.dtype, t1.dtype)
    out_dtype = jnp.dtype(out_dtype)
    assert jnp.issubdtype(out_dtype, jnp.floating), (
        "DotProduct expects floating-point inputs/output")

    inv_scale = (1.0 / math.sqrt(d)) if scale else 1.0

    # Lane-dense output: when q_len is lane-sparse but c_len is wide, compute
    # the transposed product [b, q_len, c_len] (c_len on lanes / MXU N dim)
    # and swap back in the wrapper.
    if q_len < 128 and c_len >= 128:
        out_t = _dots_core(t1, t0, inv_scale, out_dtype, compute_dtype)
        return jnp.swapaxes(out_t, 1, 2)
    return _dots_core(t0, t1, inv_scale, out_dtype, compute_dtype)


# ----------------------------------------------------------------------------
# self-test
# ----------------------------------------------------------------------------
if __name__ == "__main__":
    key = jax.random.PRNGKey(0)
    k0, k1, k2, k3, k4, k5, k6, k7 = jax.random.split(key, 8)

    # 1) module-spec demo shapes: batch=2, c_len=16, q_len=8, d=32 (tiny path)
    batch, c_len, q_len, d = 2, 16, 8, 32
    t0 = jax.random.normal(k0, (batch, c_len, d), dtype=jnp.float32)
    t1 = jax.random.normal(k1, (batch, q_len, d), dtype=jnp.float32)
    ref = jnp.einsum("bcd,bqd->bcq", t0, t1)

    out = jax.block_until_ready(dot_product(t0, t1, scale=False))
    assert out.shape == (batch, c_len, q_len)
    assert jnp.allclose(out, ref, atol=1e-4, rtol=1e-4)

    out_s = jax.block_until_ready(dot_product(t0, t1, scale=True))
    assert jnp.allclose(out_s, ref / math.sqrt(d), atol=1e-4, rtol=1e-4)

    # 2) lane-dense swap path: small q_len, wide c_len
    t0a = jax.random.normal(k2, (1, 256, 64), dtype=jnp.float32)
    t1a = jax.random.normal(k3, (1, 8, 64), dtype=jnp.float32)
    outa = jax.block_until_ready(dot_product(t0a, t1a, scale=True))
    refa = jnp.einsum("bcd,bqd->bcq", t0a, t1a) / math.sqrt(64)
    assert outa.shape == (1, 256, 8)
    assert jnp.allclose(outa, refa, atol=2e-3, rtol=2e-3)

    # 3) tiled path (c_len and q_len both >= 128)
    t0b = jax.random.normal(k4, (1, 512, 128), dtype=jnp.float32)
    t1b = jax.random.normal(k5, (1, 256, 128), dtype=jnp.float32)
    outb = jax.block_until_ready(dot_product(t0b, t1b, scale=True))
    refb = jnp.einsum("bcd,bqd->bcq", t0b, t1b) / math.sqrt(128)
    assert jnp.allclose(outb, refb, atol=2e-3, rtol=2e-3)

    # 4) multi-k, output-resident fp32 accumulation (d split over k tiles)
    t0c = jax.random.normal(k6, (1, 256, 4096), dtype=jnp.float32)
    t1c = jax.random.normal(k7, (1, 384, 4096), dtype=jnp.float32)
    outc = jax.block_until_ready(dot_product(t0c, t1c, scale=False))
    refc = jnp.einsum("bcd,bqd->bcq", t0c, t1c)
    assert jnp.allclose(outc, refc, atol=5e-2, rtol=1e-2)

    # 5) multi-k with bf16 output (fp32 scratch accumulator path)
    t0d = t0c.astype(jnp.bfloat16)
    t1d = t1c.astype(jnp.bfloat16)
    outd = jax.block_until_ready(dot_product(t0d, t1d, scale=False))
    refd = jnp.einsum("bcd,bqd->bcq", t0d.astype(jnp.float32),
                      t1d.astype(jnp.float32))
    assert outd.dtype == jnp.bfloat16
    assert jnp.allclose(outd.astype(jnp.float32), refd, atol=2.0, rtol=5e-2)

    print("KERNEL_OK")
</pallas_src>

<mosaic_0001>
module attributes {stable_mosaic.version = 11 : i64} {
  func.func @_kernel_single(%arg0: i32, %arg1: i32, %arg2: i32, %arg3: i32, %arg4: memref<1x16x32xf32, #tpu.memory_space<vmem>>, %arg5: memref<1x8x32xf32, #tpu.memory_space<vmem>>, %arg6: memref<1x16x8xf32, #tpu.memory_space<vmem>>) attributes {dimension_semantics = [#tpu.dimension_semantics<parallel>, #tpu.dimension_semantics<parallel>, #tpu.dimension_semantics<parallel>, #tpu.dimension_semantics<arbitrary>], iteration_bounds = array<i64: 2, 1, 1, 1>, scalar_prefetch = 0 : i64, scratch_operands = 0 : i64, tpu.core_type = #tpu.core_type<tc>, window_params = [{transform_indices = @transform_0, window_bounds = array<i64: 1, 16, 32>}, {transform_indices = @transform_1, window_bounds = array<i64: 1, 8, 32>}, {transform_indices = @transform_2, window_bounds = array<i64: 1, 16, 8>}]} {
    %c0 = arith.constant 0 : index
    %c0_0 = arith.constant 0 : index
    %c0_1 = arith.constant 0 : index
    %0 = vector.load %arg4[%c0, %c0_0, %c0_1] : memref<1x16x32xf32, #tpu.memory_space<vmem>>, vector<1x16x32xf32>
    %c0_2 = arith.constant 0 : index
    %c0_3 = arith.constant 0 : index
    %c0_4 = arith.constant 0 : index
    %1 = vector.load %arg5[%c0_2, %c0_3, %c0_4] : memref<1x8x32xf32, #tpu.memory_space<vmem>>, vector<1x8x32xf32>
    %cst = arith.constant dense<0.000000e+00> : vector<1x16x8xf32>
    %2 = tpu.matmul %0, %1, %cst {dimension_numbers = #tpu.dot_dimension_numbers<[2], [2], [1], [1], [0, 0, 0, 1, 1, 1], [0], [0]>} : vector<1x16x32xf32>, vector<1x8x32xf32>, vector<1x16x8xf32> -> vector<1x16x8xf32>
    %c0_5 = arith.constant 0 : index
    %c0_6 = arith.constant 0 : index
    %c0_7 = arith.constant 0 : index
    %3 = vector.load %arg6[%c0_5, %c0_6, %c0_7] : memref<1x16x8xf32, #tpu.memory_space<vmem>>, vector<1x16x8xf32>
    tpu.vector_store %arg6[%c0_5, %c0_6, %c0_7], %2 {strides = array<i32>} : memref<1x16x8xf32, #tpu.memory_space<vmem>>, vector<1x16x8xf32>,
    return
  }
  func.func @transform_0(%arg0: i32, %arg1: i32, %arg2: i32, %arg3: i32) -> (i32, i32, i32) {
    %c0_i32 = arith.constant 0 : i32
    return %arg0, %arg1, %arg3 : i32, i32, i32
  }
  func.func @transform_1(%arg0: i32, %arg1: i32, %arg2: i32, %arg3: i32) -> (i32, i32, i32) {
    %c0_i32 = arith.constant 0 : i32
    return %arg0, %arg2, %arg3 : i32, i32, i32
  }
  func.func @transform_2(%arg0: i32, %arg1: i32, %arg2: i32, %arg3: i32) -> (i32, i32, i32) {
    %c0_i32 = arith.constant 0 : i32
    return %arg0, %arg1, %arg2 : i32, i32, i32
  }
}

</mosaic_0001>

<llo_original>
// kernel: tpu_custom_call.1
$region0: #{tpu_custom_call.1}
  #allocation0 [shape = 'u32[]', space=smem, size = 0x4, offset = 0x4, fixed_abs, tag = 'smem constant byte address 0x4 - core index']
  #allocation1 [shape = 'u32[144,128]{1,0:T(1,128)}', space=vmem, size = 0x12000, scoped, tag = 'internal scratch']
  %s0 = inlined_call_operand.hbm [shape: f32[2,16,32], index: 0, kind: input, shape index: {}]
  %s1 = inlined_call_operand.hbm [shape: f32[2,8,32], index: 1, kind: input, shape index: {}]
  %s2 = inlined_call_operand.vmem [shape: f32[2,16,8], index: 2, kind: output, shape index: {}]
  %s3 = sld [smem:[#allocation0]]
  $region49: #{tpu_custom_call.1} parent=0
    _
  %s5 = ssub.s32 1, %s3
  %s6 = scalar_select 0, %s5, %s3
  $region1: #{tpu_custom_call.1} parent=0
    #allocation2 [shape = 'u8[16384]{0}', space=vmem, size = 0x4000, scoped, tag = 'input window, operand 0']
    #allocation3 [shape = 's32[2]{0}', space=sflag, size = 0x8, scoped, tag = 'scoped memory for tpu_custom_call.1']
    #allocation4 [shape = 'u8[8192]{0}', space=vmem, size = 0x2000, scoped, tag = 'input window, operand 1']
    #allocation5 [shape = 's32[2]{0}', space=sflag, size = 0x8, scoped, tag = 'scoped memory for tpu_custom_call.1']
    %7 = vsyncpa [#allocation3], 0
    %s8 = scalar_lea.sflag [#allocation3], 1
    %9 = vsyncpa %s8, 0
    %10 = vsyncpa [#allocation5], 0
    %s11 = scalar_lea.sflag [#allocation5], 1
    %12 = vsyncpa %s11, 0
    loop: start=0, step=1, limit=4
    $region2: #{tpu_custom_call.1} parent=1 // loop_pre_header
      _
    $region3: #{tpu_custom_call.1} parent=1 // loop_header
      %s14 = sphi 0, %s18
      %p15 = scmp.ge.s32.totalorder %s14, 4
      %s21 = sphi 0, %s47
      %s22 = sphi 0, %s43
      %s23 = sphi 0, %s39
      %s24 = sphi 0, %s35
      %s25 = sphi 0, %s21
      %s26 = sphi 0, %s22
      %s27 = sphi 0, %s23
      %s28 = sphi 0, %s24
      %s29 = sphi 0, %s25
      %s30 = sphi 0, %s26
      %s31 = sphi 0, %s27
      %s32 = sphi 0, %s28
      %s54 = sphi 0, %s56
      %s57 = sphi 0, %s54
      %s58 = sphi 0, %s57
      %s74 = sphi 0, %s58
      %s84 = sphi 0, %s86
      %s87 = sphi 0, %s84
      %s88 = sphi 0, %s87
      %s104 = sphi 0, %s88
      %s114 = sphi 0, %s116
      %s117 = sphi 0, %s114
      %s118 = sphi 0, %s117
      %s134 = sphi 0, %s118
    $region4: #{tpu_custom_call.1} parent=1 // loop_header_branch
      %17 = sbr.rel (%p15) target = $region8
    $region5: #{tpu_custom_call.1} parent=1 // loop_body
      %s19 = ssub.s32 %s14, 1
      %s20 = ssub.s32 %s14, 2
      %s33 = sadd.s32 1, %s24
      %p34 = scmp.ge.s32.totalorder %s33, 1
      %s35 = scalar_select %p34, 0, %s33
      %s36 = sadd.s32 1, %s23
      %s37 = scalar_select %p34, %s36, %s23
      %p38 = scmp.ge.s32.totalorder %s37, 1
      %s39 = scalar_select %p38, 0, %s37
      %s40 = sadd.s32 1, %s22
      %s41 = scalar_select %p38, %s40, %s22
      %p42 = scmp.ge.s32.totalorder %s41, 1
      %s43 = scalar_select %p42, 0, %s41
      %s44 = sadd.s32 1, %s21
      %s45 = scalar_select %p42, %s44, %s21
      %p46 = scmp.ge.s32.totalorder %s45, 2
      %s47 = scalar_select %p46, 0, %s45
      %s48 = ssub.s32 %s21, %s47
      %s49 = ssub.s32 %s22, %s43
      %s50 = sor.u32 %s48, %s49
      %s51 = ssub.s32 %s24, %s35
      %s52 = sor.u32 %s50, %s51
      %p53 = scmp.eq.s32.totalorder %s52, 0
      %s55 = sadd.s32 %s54, 1
      %s56 = scalar_select %p53, %s54, %s55
      %p59 = pneg %p53
      %p60 = scmp.eq.s32.totalorder %s14, 1
      %p61 = por %p59, %p60
      %p62 = scmp.ne.s32.totalorder %s54, %s57
      %p63 = scmp.eq.s32.totalorder %s14, 0
      %p64 = por %p62, %p63
      %p65 = scmp.ne.s32.totalorder %s54, %s57
      %p66 = scmp.eq.s32.totalorder %s19, 1
      %p67 = por %p65, %p66
      %p68 = scmp.ne.s32.totalorder %s57, %s58
      %p69 = scmp.eq.s32.totalorder %s19, 0
      %p70 = por %p68, %p69
      %p71 = scmp.ne.s32.totalorder %s57, %s58
      %p72 = scmp.eq.s32.totalorder %s20, 1
      %p73 = por %p71, %p72
      %p75 = scmp.ne.s32.totalorder %s58, %s74
      %p76 = scmp.eq.s32.totalorder %s20, 0
      %p77 = por %p75, %p76
      %s78 = ssub.s32 %s21, %s47
      %s79 = ssub.s32 %s23, %s39
      %s80 = sor.u32 %s78, %s79
      %s81 = ssub.s32 %s24, %s35
      %s82 = sor.u32 %s80, %s81
      %p83 = scmp.eq.s32.totalorder %s82, 0
      %s85 = sadd.s32 %s84, 1
      %s86 = scalar_select %p83, %s84, %s85
      %p89 = pneg %p83
      %p90 = scmp.eq.s32.totalorder %s14, 1
      %p91 = por %p89, %p90
      %p92 = scmp.ne.s32.totalorder %s84, %s87
      %p93 = scmp.eq.s32.totalorder %s14, 0
      %p94 = por %p92, %p93
      %p95 = scmp.ne.s32.totalorder %s84, %s87
      %p96 = scmp.eq.s32.totalorder %s19, 1
      %p97 = por %p95, %p96
      %p98 = scmp.ne.s32.totalorder %s87, %s88
      %p99 = scmp.eq.s32.totalorder %s19, 0
      %p100 = por %p98, %p99
      %p101 = scmp.ne.s32.totalorder %s87, %s88
      %p102 = scmp.eq.s32.totalorder %s20, 1
      %p103 = por %p101, %p102
      %p105 = scmp.ne.s32.totalorder %s88, %s104
      %p106 = scmp.eq.s32.totalorder %s20, 0
      %p107 = por %p105, %p106
      %s108 = ssub.s32 %s21, %s47
      %s109 = ssub.s32 %s22, %s43
      %s110 = sor.u32 %s108, %s109
      %s111 = ssub.s32 %s23, %s39
      %s112 = sor.u32 %s110, %s111
      %p113 = scmp.eq.s32.totalorder %s112, 0
      %s115 = sadd.s32 %s114, 1
      %s116 = scalar_select %p113, %s114, %s115
      %p119 = pneg %p113
      %p120 = scmp.eq.s32.totalorder %s14, 1
      %p121 = por %p119, %p120
      %p122 = scmp.ne.s32.totalorder %s114, %s117
      %p123 = scmp.eq.s32.totalorder %s14, 0
      %p124 = por %p122, %p123
      %p125 = scmp.ne.s32.totalorder %s114, %s117
      %p126 = scmp.eq.s32.totalorder %s19, 1
      %p127 = por %p125, %p126
      %p128 = scmp.ne.s32.totalorder %s117, %s118
      %p129 = scmp.eq.s32.totalorder %s19, 0
      %p130 = por %p128, %p129
      %p131 = scmp.ne.s32.totalorder %s117, %s118
      %p132 = scmp.eq.s32.totalorder %s20, 1
      %p133 = por %p131, %p132
      %p135 = scmp.ne.s32.totalorder %s118, %s134
      %p136 = scmp.eq.s32.totalorder %s20, 0
      %p137 = por %p135, %p136
      %p138 = scmp.le.s32.totalorder 1, %s14
      %p139 = scmp.lt.s32.totalorder %s14, 3
      %p140 = pnand %p138, %p139
      %p141 = pneg %p140
      // Predicated region
      $region9: #{tpu_custom_call.1} parent=5 // pred_check
        _
      $region10: #{tpu_custom_call.1} parent=5 // pred_check_branch
        %143 = sbr.rel (%p140) target = $region12
      $region11: #{tpu_custom_call.1} parent=5 // pred_region
        %s144 = ssub.s32 %s14, 1
      $region12: #{tpu_custom_call.1} parent=5 // pred_fallthru
        _
      %p145 = scmp.lt.s32.totalorder %s14, 2
      // Predicated region
      $region13: #{tpu_custom_call.1} parent=5 // pred_check
        %p146 = pneg %p145
      $region14: #{tpu_custom_call.1} parent=5 // pred_check_branch
        %148 = sbr.rel (%p146) target = $region16
      $region15: #{tpu_custom_call.1} parent=5 // pred_region
        // Predicated region
        $region17: #{tpu_custom_call.1} parent=15 // pred_check
          %p149 = pneg %p64
        $region18: #{tpu_custom_call.1} parent=15 // pred_check_branch
          %151 = sbr.rel (%p149) target = $region20
        $region19: #{tpu_custom_call.1} parent=15 // pred_region
          %s152 = sand.u32 %s54, 1
          %s153 = scalar_lea.sflag [#allocation3], %s152
          %s154 = sand.u32 %s54, 1
          %s155 = smul.addr %s154, 16
          %s156 = scalar_lea.vmem [#allocation2], %s155
          %s157 = smul.u32 2, %s22
          %s159 = ssub.s32 256, 256
          %160 = vsyncadd %s153, %s159
          %s161 = sadd.s32 %s24, %s157
          %s162 = smul.addr %s21, 2
          %s163 = sadd.s32 %s161, %s162
          %s164 = smul.addr %s163, 128
          %s165 = scalar_lea.hbm %s0, %s164
          %s166 = sshll.u32 %s156, 4
          %s167 = int_to_ptr.vmem [resolvable:$true] %s166
          %172 = dma.hbm_to_vmem [thread:$0]  %s165, 256, %s167, %s153, 128, 128, 8
        $region20: #{tpu_custom_call.1} parent=15 // pred_fallthru
          _
        // Predicated region
        $region21: #{tpu_custom_call.1} parent=15 // pred_check
          %p173 = pneg %p94
        $region22: #{tpu_custom_call.1} parent=15 // pred_check_branch
          %175 = sbr.rel (%p173) target = $region24
        $region23: #{tpu_custom_call.1} parent=15 // pred_region
          %s176 = sand.u32 %s84, 1
          %s177 = scalar_lea.sflag [#allocation5], %s176
          %s178 = sand.u32 %s84, 1
          %s179 = smul.addr %s178, 8
          %s180 = scalar_lea.vmem [#allocation4], %s179
          %s182 = ssub.s32 128, 128
          %183 = vsyncadd %s177, %s182
          %s184 = sadd.s32 %s24, %s23
          %s185 = sadd.s32 %s184, %s21
          %s186 = smul.addr %s185, 128
          %s187 = scalar_lea.hbm %s1, %s186
          %s189 = sshll.u32 %s180, 4
          %s190 = int_to_ptr.vmem [resolvable:$true] %s189
          %192 = dma.hbm_to_vmem [thread:$0]  %s187, 128, %s190, %s177
        $region24: #{tpu_custom_call.1} parent=15 // pred_fallthru
          _
      $region16: #{tpu_custom_call.1} parent=5 // pred_fallthru
        _
      %p193 = scmp.le.s32.totalorder 1, %s14
      %p194 = scmp.lt.s32.totalorder %s14, 3
      %p195 = pnand %p193, %p194
      %p196 = pneg %p195
      // Predicated region
      $region25: #{tpu_custom_call.1} parent=5 // pred_check
        _
      $region26: #{tpu_custom_call.1} parent=5 // pred_check_branch
        %198 = sbr.rel (%p195) target = $region28
      $region27: #{tpu_custom_call.1} parent=5 // pred_region
        %s199 = ssub.s32 %s14, 1
        %s200 = sand.u32 %s57, 1
        %s201 = scalar_lea.sflag [#allocation3], %s200
        %s202 = sand.u32 %s57, 1
        %s203 = smul.addr %s202, 16
        %s204 = scalar_lea.vmem [#allocation2], %s203
        // Predicated region
        $region29: #{tpu_custom_call.1} parent=27 // pred_check
          %p205 = pneg %p70
        $region30: #{tpu_custom_call.1} parent=27 // pred_check_branch
          %207 = sbr.rel (%p205) target = $region32
        $region31: #{tpu_custom_call.1} parent=27 // pred_region
          %208 = dma.done %s201, 256
        $region32: #{tpu_custom_call.1} parent=27 // pred_fallthru
          _
        %s209 = sand.u32 %s87, 1
        %s210 = scalar_lea.sflag [#allocation5], %s209
        %s211 = sand.u32 %s87, 1
        %s212 = smul.addr %s211, 8
        %s213 = scalar_lea.vmem [#allocation4], %s212
        // Predicated region
        $region33: #{tpu_custom_call.1} parent=27 // pred_check
          %p214 = pneg %p100
        $region34: #{tpu_custom_call.1} parent=27 // pred_check_branch
          %216 = sbr.rel (%p214) target = $region36
        $region35: #{tpu_custom_call.1} parent=27 // pred_region
          %217 = dma.done %s210, 128
        $region36: #{tpu_custom_call.1} parent=27 // pred_fallthru
          _
        %s218 = sand.u32 %s57, 1
        %s219 = scalar_lea.sflag [#allocation3], %s218
        %s220 = sand.u32 %s57, 1
        %s221 = smul.addr %s220, 16
        %s222 = scalar_lea.vmem [#allocation2], %s221
        %p223 = pneg %p70
        %p224 = pneg %p67
        %s225 = sand.u32 %s87, 1
        %s226 = scalar_lea.sflag [#allocation5], %s225
        %s227 = sand.u32 %s87, 1
        %s228 = smul.addr %s227, 8
        %s229 = scalar_lea.vmem [#allocation4], %s228
        %p230 = pneg %p100
        %p231 = pneg %p97
        %p232 = pneg %p130
        %p233 = pneg %p127
        %s234 = smul.u32 2, %s26
        %p235 = scmp.lt.s32.totalorder %s25, 1
        %s236 = scalar_select %p235, %s25, 1
        %p237 = scmp.lt.s32.totalorder %s234, 1
        %s238 = scalar_select %p237, %s234, 1
        %p239 = scmp.lt.s32.totalorder %s27, 0
        %s240 = scalar_select %p239, %s27, 0
        %s241 = sadd.s32 %s240, %s238
        %s242 = smul.addr %s236, 2
        %s243 = sadd.s32 %s241, %s242
        %s244 = smul.addr %s243, 8
        %s245 = scalar_lea.vmem %s2, %s244
        %s246 = smul.u32 2, %s26
        %s247 = smul.u32 2, %s26
        %p248 = scmp.lt.s32.totalorder %s25, 1
        %s249 = scalar_select %p248, %s25, 1
        %p250 = scmp.lt.s32.totalorder %s247, 1
        %s251 = scalar_select %p250, %s247, 1
        %p252 = scmp.lt.s32.totalorder %s27, 0
        %s253 = scalar_select %p252, %s27, 0
        %s254 = sadd.s32 %s253, %s251
        %s255 = smul.addr %s249, 2
        %s256 = sadd.s32 %s254, %s255
        %s257 = smul.addr %s256, 8
        %s258 = scalar_lea.vmem %s2, %s257
        %s259 = smul.u32 2, %s26
        %v260 = vld [vmem:[%s204] sm:$0xff]
        %v261 = vld [vmem:[%s204 + $0x8] sm:$0xff]
        %v262 = vld [vmem:[%s213] sm:$0xff]
        %vm263 = vcmask 261120
        %v265 = vsel %vm263, %v260, 0
        %v268 = vsel %vm263, %v261, 0
        %v271 = vsel %vm263, %v262, 0
        %273 = vmatprep.subr.mxu0 0.0
        %274 = vmatpush1.xpose.msra.mxu0 %v271
        %275 = vmatprep.subr.mxu0 0.0
        %276 = vmatpush1.xpose.msra.mxu0 0.0
        %277 = vmatprep.subr.mxu0 0.0
        %278 = vmatpush1.xpose.msra.mxu0 0.0
        %279 = vmatprep.subr.mxu0 0.0
        %280 = vmatpush1.xpose.msra.mxu0 0.0
        %281 = vmatprep.subr.mxu0 0.0
        %282 = vmatpush1.xpose.msra.mxu0 0.0
        %283 = vmatprep.subr.mxu0 0.0
        %284 = vmatpush1.xpose.msra.mxu0 0.0
        %285 = vmatprep.subr.mxu0 0.0
        %286 = vmatpush1.xpose.msra.mxu0 0.0
        %287 = vmatprep.subr.mxu0 0.0
        %288 = vmatpush1.xpose.msra.mxu0 0.0
        %289 = vmatprep.subr.mxu0 0.0
        %290 = vmatpush1.xpose.msra.mxu0 0.0
        %291 = vmatprep.subr.mxu0 0.0
        %292 = vmatpush1.xpose.msra.mxu0 0.0
        %293 = vmatprep.subr.mxu0 0.0
        %294 = vmatpush1.xpose.msra.mxu0 0.0
        %295 = vmatprep.subr.mxu0 0.0
        %296 = vmatpush1.xpose.msra.mxu0 0.0
        %297 = vmatprep.subr.mxu0 0.0
        %298 = vmatpush1.xpose.msra.mxu0 0.0
        %299 = vmatprep.subr.mxu0 0.0
        %300 = vmatpush1.xpose.msra.mxu0 0.0
        %301 = vmatprep.subr.mxu0 0.0
        %302 = vmatpush1.xpose.msra.mxu0 0.0
        %303 = vmatprep.subr.mxu0 0.0
        %304 = vmatpush1.xpose.msra.mxu0 0.0
        %305 = vmatprep.subr.mxu0 0.0
        %306 = vmatpush1.xpose.msra.mxu0 0.0
        %307 = vmatprep.subr.mxu0 0.0
        %308 = vmatpush1.xpose.msra.mxu0 0.0
        %309 = vmatprep.subr.mxu0 0.0
        %310 = vmatpush1.xpose.msra.mxu0 0.0
        %311 = vmatprep.subr.mxu0 0.0
        %312 = vmatpush1.xpose.msra.mxu0 0.0
        %313 = vmatprep.subr.mxu0 0.0
        %314 = vmatpush1.xpose.msra.mxu0 0.0
        %315 = vmatprep.subr.mxu0 0.0
        %316 = vmatpush1.xpose.msra.mxu0 0.0
        %317 = vmatprep.subr.mxu0 0.0
        %318 = vmatpush1.xpose.msra.mxu0 0.0
        %319 = vmatprep.subr.mxu0 0.0
        %320 = vmatpush1.xpose.msra.mxu0 0.0
        %321 = vmatprep.subr.mxu0 0.0
        %322 = vmatpush1.xpose.msra.mxu0 0.0
        %323 = vmatprep.subr.mxu0 0.0
        %324 = vmatpush1.xpose.msra.mxu0 0.0
        %325 = vmatprep.subr.mxu0 0.0
        %326 = vmatpush1.xpose.msra.mxu0 0.0
        %327 = vmatprep.subr.mxu0 0.0
        %328 = vmatpush1.xpose.msra.mxu0 0.0
        %329 = vmatprep.subr.mxu0 0.0
        %330 = vmatpush1.xpose.msra.mxu0 0.0
        %331 = vmatprep.subr.mxu0 0.0
        %332 = vmatpush1.xpose.msra.mxu0 0.0
        %333 = vmatprep.subr.mxu0 0.0
        %334 = vmatpush1.xpose.msra.mxu0 0.0
        %335 = vmatprep.subr.mxu0 0.0
        %336 = vmatpush1.xpose.msra.mxu0 0.0
        %337 = vmatprep.mubr.f32.mxu0 0.0
        %338 = vmatmul.mubr.f32.gmra.mrb[0].mxu0 %v265
        %v339 = vpop.f32.mrb[0].mxu0
        %v340 = vadd.f32 0.0, %v339
        %v341 = vpop.f32.mrb[0].mxu0
        %342 = vmatprep.mubr.f32.mxu0 0.0
        %343 = vmatmul.mubr.f32.gmra.mrb[0].mxu0 %v268
        %v344 = vpop.f32.mrb[0].mxu0
        %v345 = vadd.f32 0.0, %v344
        %v346 = vpop.f32.mrb[0].mxu0
        %347 = vdwg.mxu0
        %vm348 = vcmask 64512
        %349 = vst.msk [vmem:[%s258] sm:$0xff] %vm348, %v340
        %350 = vst.msk [vmem:[%s258 + $0x8] sm:$0xff] %vm348, %v345
        %s351 = smul.u32 2, %s26
        %p352 = scmp.lt.s32.totalorder %s25, 1
        %s353 = scalar_select %p352, %s25, 1
        %p354 = scmp.lt.s32.totalorder %s351, 1
        %s355 = scalar_select %p354, %s351, 1
        %p356 = scmp.lt.s32.totalorder %s27, 0
        %s357 = scalar_select %p356, %s27, 0
        %s358 = sadd.s32 %s357, %s355
        %s359 = smul.addr %s353, 2
        %s360 = sadd.s32 %s358, %s359
        %s361 = smul.addr %s360, 8
        %s362 = scalar_lea.vmem %s2, %s361
        // Predicated region
        $region37: #{tpu_custom_call.1} parent=27 // pred_check
          %p363 = pneg %p127
        $region38: #{tpu_custom_call.1} parent=27 // pred_check_branch
          %365 = sbr.rel (%p363) target = $region40
        $region39: #{tpu_custom_call.1} parent=27 // pred_region
          %s366 = smul.u32 2, %s26
        $region40: #{tpu_custom_call.1} parent=27 // pred_fallthru
          _
      $region28: #{tpu_custom_call.1} parent=5 // pred_fallthru
        _
      %p367 = scmp.le.s32.totalorder 2, %s14
      // Predicated region
      $region41: #{tpu_custom_call.1} parent=5 // pred_check
        %p368 = pneg %p367
      $region42: #{tpu_custom_call.1} parent=5 // pred_check_branch
        %370 = sbr.rel (%p368) target = $region44
      $region43: #{tpu_custom_call.1} parent=5 // pred_region
        %s371 = ssub.s32 %s14, 2
        // Predicated region
        $region45: #{tpu_custom_call.1} parent=43 // pred_check
          %p372 = pneg %p133
        $region46: #{tpu_custom_call.1} parent=43 // pred_check_branch
          %374 = sbr.rel (%p372) target = $region48
        $region47: #{tpu_custom_call.1} parent=43 // pred_region
          %s375 = smul.u32 2, %s30
          %p376 = scmp.lt.s32.totalorder %s29, 1
          %s377 = scalar_select %p376, %s29, 1
          %p378 = scmp.lt.s32.totalorder %s375, 1
          %s379 = scalar_select %p378, %s375, 1
          %p380 = scmp.lt.s32.totalorder %s31, 0
          %s381 = scalar_select %p380, %s31, 0
          %s382 = sadd.s32 %s381, %s379
          %s383 = smul.addr %s377, 2
          %s384 = sadd.s32 %s382, %s383
          %s385 = smul.addr %s384, 8
          %s386 = scalar_lea.vmem %s2, %s385
        $region48: #{tpu_custom_call.1} parent=43 // pred_fallthru
          _
      $region44: #{tpu_custom_call.1} parent=5 // pred_fallthru
        _
    $region6: #{tpu_custom_call.1} parent=1 // loop_footer
      %s18 = sadd.s32 1, %s14
    $region7: #{tpu_custom_call.1} parent=1 // loop_footer_branch
      %13 = sbr.rel target = $region3
    $region8: #{tpu_custom_call.1} parent=1 // loop_exit
      _
    %387 = vsyncpa [#allocation3], 1
    %s388 = scalar_lea.sflag [#allocation3], 1
    %389 = vsyncpa %s388, 1
    %390 = vsyncpa [#allocation5], 1
    %s391 = scalar_lea.sflag [#allocation5], 1
    %392 = vsyncpa %s391, 1

</llo_original>
